<compile_context>
chip_gen: v7x
topology: tpu7x:2x2x1
jax: 0.10.0
libtpu: 0.0.40
codegen_flags: <defaults>
</compile_context>

<pallas_src>
import functools
import numpy as np
import jax
import jax.numpy as jnp
from jax.experimental import pallas as pl
from jax.experimental.pallas import tpu as pltpu


# ----------------------------------------------------------------------------
# Helpers
# ----------------------------------------------------------------------------
def _round_up(x, m):
    return (x + m - 1) // m * m


# ----------------------------------------------------------------------------
# Tiled GEMM kernels (bf16 inputs, f32 accumulation, fused bias + activation)
# ----------------------------------------------------------------------------
def _mm_kernel(a_ref, b_ref, bias_ref, o_ref, acc_ref, *, act):
    @pl.when(pl.program_id(2) == 0)
    def _():
        acc_ref[...] = jnp.zeros_like(acc_ref)

    acc_ref[...] += jnp.dot(a_ref[...], b_ref[...],
                            preferred_element_type=jnp.float32)

    @pl.when(pl.program_id(2) == pl.num_programs(2) - 1)
    def _():
        y = acc_ref[...] + bias_ref[...]
        if act == "relu":
            y = jnp.maximum(y, 0.0)
        elif act == "sigmoid":
            y = jax.nn.sigmoid(y)
        elif act == "tanh":
            y = jnp.tanh(y)
        o_ref[...] = y.astype(o_ref.dtype)


def _mm_kernel_prelu(a_ref, b_ref, bias_ref, alpha_ref, o_ref, acc_ref):
    @pl.when(pl.program_id(2) == 0)
    def _():
        acc_ref[...] = jnp.zeros_like(acc_ref)

    acc_ref[...] += jnp.dot(a_ref[...], b_ref[...],
                            preferred_element_type=jnp.float32)

    @pl.when(pl.program_id(2) == pl.num_programs(2) - 1)
    def _():
        y = acc_ref[...] + bias_ref[...]
        o_ref[...] = jnp.where(y > 0, y, alpha_ref[...] * y).astype(o_ref.dtype)


def _mm_kernel_tanh_res(a_ref, b_ref, bias_ref, res_ref, o_ref, acc_ref):
    # Final conv: output = residual + tanh(a @ w + bias), fused epilogue.
    @pl.when(pl.program_id(2) == 0)
    def _():
        acc_ref[...] = jnp.zeros_like(acc_ref)

    acc_ref[...] += jnp.dot(a_ref[...], b_ref[...],
                            preferred_element_type=jnp.float32)

    @pl.when(pl.program_id(2) == pl.num_programs(2) - 1)
    def _():
        y = jnp.tanh(acc_ref[...] + bias_ref[...]) + res_ref[...]
        o_ref[...] = y.astype(o_ref.dtype)


# Cap single-pass K so worst-case double-buffered tiles stay well under v5e's
# scoped VMEM (and leave headroom on v7x's 64 MiB physical VMEM).
_MAX_SINGLE_K = 2048
_VMEM_LIMIT = 48 * 1024 * 1024


def pallas_matmul(a, w, bias=None, act="none", alpha=None,
                  out_dtype=jnp.float32, residual=None):
    """C = act(a @ w + bias) [+ residual].  a:(M,K) w:(K,N) bias/alpha:(N,).

    bf16 x bf16 MXU with a float32 VMEM accumulator; output dtype selectable so
    intermediate activations can be written back in bf16."""
    M, K = a.shape
    Kw, N = w.shape
    assert K == Kw
    if bias is None:
        bias = jnp.zeros((N,), jnp.float32)

    # --- tile selection ------------------------------------------------
    Np = _round_up(N, 128)
    tn = 256 if Np % 256 == 0 else 128

    Kp = _round_up(K, 128)
    if Kp <= _MAX_SINGLE_K:
        tk = Kp                                  # single K step
    else:
        Kp = _round_up(K, 512)
        tk = 512

    if M <= 512:
        Mp = max(M, 8)                           # >=8 sublanes, no huge padding
        tm = Mp
    elif M % 512 == 0:
        Mp, tm = M, 512
    elif M % 256 == 0:
        Mp, tm = M, 256
    elif M % 128 == 0:
        Mp, tm = M, 128
    else:
        Mp, tm = _round_up(M, 256), 256

    # v7x: make sure there are >=2 blocks along a parallel axis when cheap.
    if Mp // tm == 1 and tn == 256 and Np == 256:
        tn = 128

    a = a.astype(jnp.bfloat16)
    w = w.astype(jnp.bfloat16)
    if (Mp != M) or (Kp != K):
        a = jnp.pad(a, ((0, Mp - M), (0, Kp - K)))
    if (Kp != K) or (Np != N):
        w = jnp.pad(w, ((0, Kp - K), (0, Np - N)))
    b_p = jnp.pad(bias.astype(jnp.float32), (0, Np - N)).reshape(1, Np)

    in_specs = [
        pl.BlockSpec((tm, tk), lambda i, j, k: (i, k)),
        pl.BlockSpec((tk, tn), lambda i, j, k: (k, j)),
        pl.BlockSpec((1, tn), lambda i, j, k: (0, j)),
    ]
    if residual is not None:
        assert act == "tanh"
        res = residual.astype(jnp.float32)
        if (Mp != M) or (Np != N):
            res = jnp.pad(res, ((0, Mp - M), (0, Np - N)))
        kernel = _mm_kernel_tanh_res
        in_specs = in_specs + [pl.BlockSpec((tm, tn), lambda i, j, k: (i, j))]
        operands = (a, w, b_p, res)
    elif act == "prelu":
        assert alpha is not None
        al_p = jnp.pad(alpha.astype(jnp.float32), (0, Np - N)).reshape(1, Np)
        kernel = _mm_kernel_prelu
        in_specs = in_specs + [pl.BlockSpec((1, tn), lambda i, j, k: (0, j))]
        operands = (a, w, b_p, al_p)
    else:
        kernel = functools.partial(_mm_kernel, act=act)
        operands = (a, w, b_p)

    out = pl.pallas_call(
        kernel,
        out_shape=jax.ShapeDtypeStruct((Mp, Np), out_dtype),
        grid_spec=pltpu.PrefetchScalarGridSpec(
            num_scalar_prefetch=0,
            grid=(Mp // tm, Np // tn, Kp // tk),
            in_specs=in_specs,
            out_specs=pl.BlockSpec((tm, tn), lambda i, j, k: (i, j)),
            scratch_shapes=[pltpu.VMEM((tm, tn), jnp.float32)],
        ),
        compiler_params=pltpu.CompilerParams(
            dimension_semantics=("parallel", "parallel", "arbitrary"),
            vmem_limit_bytes=_VMEM_LIMIT),
    )(*operands)

    if (Mp != M) or (Np != N):
        out = out[:M, :N]
    return out


# ----------------------------------------------------------------------------
# Small fused kernels
# ----------------------------------------------------------------------------
def _gap_kernel(x_ref, o_ref):
    o_ref[...] = jnp.mean(x_ref[...].astype(jnp.float32), axis=1, keepdims=True)


def pallas_gap(x):
    """Global average pool: (B, L, C) -> (B, 1, C) f32 (bf16 input OK)."""
    B, L, C = x.shape
    return pl.pallas_call(
        _gap_kernel,
        out_shape=jax.ShapeDtypeStruct((B, 1, C), jnp.float32),
        grid=(B,),
        in_specs=[pl.BlockSpec((1, L, C), lambda b: (b, 0, 0))],
        out_specs=pl.BlockSpec((1, 1, C), lambda b: (b, 0, 0)),
    )(x)


def _ca_kernel(x_ref, w1_ref, b1_ref, w2_ref, b2_ref, o_ref, *, C, g, L):
    # GAP -> 1x1 conv + ReLU -> 1x1 conv + Sigmoid -> channel rescale, fused.
    # For C < 128 the map arrives in a lane-dense folded layout (L*C/128, 128):
    # lane l of every row holds channel l % C, so the channel sum is a row-sum
    # folded g = 128/C ways, and the gate is tiled g times before the rescale.
    x = x_ref[0]                                                    # bf16
    s = jnp.sum(x.astype(jnp.float32), axis=0, keepdims=True)       # (1, lanes)
    if g > 1:
        s = jnp.sum(s.reshape(g, C), axis=0, keepdims=True)         # (1, C)
    m = s * (1.0 / L)
    h = jnp.dot(m, w1_ref[...], preferred_element_type=jnp.float32) + b1_ref[...]
    h = jnp.maximum(h, 0.0)
    y = jnp.dot(h, w2_ref[...], preferred_element_type=jnp.float32) + b2_ref[...]
    y = jax.nn.sigmoid(y)                                           # (1, C)
    if g > 1:
        y = jnp.tile(y, (1, g))                                      # (1, 128)
    o_ref[0] = x * y.astype(x.dtype)


def ca_layer(x, p):
    """CALayer: x * sigmoid(conv1x1(relu(conv1x1(avgpool(x))))). One Pallas call."""
    B, H, W, C = x.shape
    L = H * W
    x = x.astype(jnp.bfloat16)
    C4 = p['w1'].shape[1]
    HP = 128                                                  # padded hidden width
    w1p = jnp.pad(p['w1'].astype(jnp.float32), ((0, 0), (0, HP - C4)))
    b1p = jnp.pad(p['b1'].astype(jnp.float32), (0, HP - C4)).reshape(1, HP)
    w2p = jnp.pad(p['w2'].astype(jnp.float32), ((0, HP - C4), (0, 0)))
    b2 = p['b2'].astype(jnp.float32).reshape(1, C)

    if C < 128 and 128 % C == 0 and (L * C) % 128 == 0:
        g = 128 // C
        rows, lanes = (L * C) // 128, 128        # lane-dense folded layout
    else:
        g = 1
        rows, lanes = L, C                       # C is already a multiple of 128
    xf = x.reshape(B, rows, lanes)               # contiguous reshape, no copy

    out = pl.pallas_call(
        functools.partial(_ca_kernel, C=C, g=g, L=L),
        out_shape=jax.ShapeDtypeStruct((B, rows, lanes), jnp.bfloat16),
        grid=(B,),
        in_specs=[pl.BlockSpec((1, rows, lanes), lambda b: (b, 0, 0)),
                  pl.BlockSpec((C, HP), lambda b: (0, 0)),
                  pl.BlockSpec((1, HP), lambda b: (0, 0)),
                  pl.BlockSpec((HP, C), lambda b: (0, 0)),
                  pl.BlockSpec((1, C), lambda b: (0, 0))],
        out_specs=pl.BlockSpec((1, rows, lanes), lambda b: (b, 0, 0)),
    )(xf, w1p, b1p, w2p, b2)
    return out.reshape(B, H, W, C)


def _reparam_kernel(m_ref, lv_ref, e_ref, o_ref):
    o_ref[...] = m_ref[...] + e_ref[...] * jnp.exp(lv_ref[...] * 0.5)


def pallas_reparam(mean, log_var, eps):
    B, D = mean.shape
    return pl.pallas_call(
        _reparam_kernel,
        out_shape=jax.ShapeDtypeStruct((B, D), jnp.float32),
        grid=(1,),
        in_specs=[pl.BlockSpec((B, D), lambda i: (0, 0))] * 3,
        out_specs=pl.BlockSpec((B, D), lambda i: (0, 0)),
    )(mean.astype(jnp.float32), log_var.astype(jnp.float32),
      eps.astype(jnp.float32))


def _ln_kernel(x_ref, g_ref, b_ref, o_ref):
    x = x_ref[...]
    mu = jnp.mean(x, axis=-1, keepdims=True)
    var = jnp.mean((x - mu) ** 2, axis=-1, keepdims=True)
    o_ref[...] = (x - mu) * jax.lax.rsqrt(var + 1e-5) * g_ref[...] + b_ref[...]


def pallas_layernorm(x, gamma, beta):
    B, D = x.shape
    return pl.pallas_call(
        _ln_kernel,
        out_shape=jax.ShapeDtypeStruct((B, D), jnp.float32),
        grid=(1,),
        in_specs=[pl.BlockSpec((B, D), lambda i: (0, 0)),
                  pl.BlockSpec((1, D), lambda i: (0, 0)),
                  pl.BlockSpec((1, D), lambda i: (0, 0))],
        out_specs=pl.BlockSpec((B, D), lambda i: (0, 0)),
    )(x.astype(jnp.float32),
      gamma.reshape(1, D).astype(jnp.float32),
      beta.reshape(1, D).astype(jnp.float32))


# ----------------------------------------------------------------------------
# Conv / conv-transpose / interpolation glue (NHWC)
# ----------------------------------------------------------------------------
def _im2col(x, k, stride, pad):
    # TODO(synk): host-side im2col (bf16); in-kernel halo-tile im2col would avoid
    # the 9x HBM blowup entirely.
    B, H, W, C = x.shape
    xp = jnp.pad(x, ((0, 0), (pad, pad), (pad, pad), (0, 0)))
    Hp, Wp = H + 2 * pad, W + 2 * pad
    Ho = (Hp - k) // stride + 1
    Wo = (Wp - k) // stride + 1
    cols = []
    for dy in range(k):
        for dx in range(k):
            cols.append(xp[:, dy:dy + stride * (Ho - 1) + 1:stride,
                           dx:dx + stride * (Wo - 1) + 1:stride, :])
    return jnp.concatenate(cols, axis=-1), Ho, Wo


def conv2d(x, w, b, *, stride=1, pad=1, act="none", alpha=None,
           out_dtype=jnp.bfloat16, residual=None):
    """x: (B,H,W,Cin) NHWC;  w: (Cout,Cin,k,k) (PyTorch layout);  b: (Cout,)."""
    x = x.astype(jnp.bfloat16)                 # bf16 im2col buffer
    B = x.shape[0]
    Cout, Cin, kh, kw = w.shape
    cols, Ho, Wo = _im2col(x, kh, stride, pad)
    a = cols.reshape(B * Ho * Wo, kh * kw * Cin)
    wm = jnp.transpose(w, (2, 3, 1, 0)).reshape(kh * kw * Cin, Cout)
    res = None
    if residual is not None:
        res = residual.reshape(B * Ho * Wo, Cout)
    out = pallas_matmul(a, wm, b, act=act, alpha=alpha,
                        out_dtype=out_dtype, residual=res)
    return out.reshape(B, Ho, Wo, Cout)


def conv_transpose2d(x, w, b):
    """PyTorch ConvTranspose2d(k=3, s=2, p=1, op=1) via sub-pixel decomposition.

    out[2u,   2v  ] = x[u,v]   @ W[1,1]
    out[2u,   2v+1] = x[u,v]   @ W[1,2] + x[u,v+1]  @ W[1,0]
    out[2u+1, 2v  ] = x[u,v]   @ W[2,1] + x[u+1,v]  @ W[0,1]
    out[2u+1, 2v+1] = x[u,v]   @ W[2,2] + x[u,v+1]  @ W[2,0]
                    + x[u+1,v] @ W[0,2] + x[u+1,v+1]@ W[0,0]
    (W indexed [ky,kx]; OOB neighbors are zero) -> 4x less GEMM work than the
    zero-dilated formulation.  w: (Cin,Cout,3,3)."""
    x = x.astype(jnp.bfloat16)
    B, H, W, Cin = x.shape
    _, Cout, _, _ = w.shape
    wf = w.astype(jnp.float32)
    wk = lambda ky, kx: wf[:, :, ky, kx]                       # (Cin, Cout)

    x_w = jnp.pad(x[:, :, 1:, :], ((0, 0), (0, 0), (0, 1), (0, 0)))
    x_h = jnp.pad(x[:, 1:, :, :], ((0, 0), (0, 1), (0, 0), (0, 0)))
    x_hw = jnp.pad(x[:, 1:, 1:, :], ((0, 0), (0, 1), (0, 1), (0, 0)))
    flat = lambda t: t.reshape(B * H * W, -1)

    p00 = pallas_matmul(flat(x), wk(1, 1), b, out_dtype=jnp.bfloat16)
    p01 = pallas_matmul(flat(jnp.concatenate([x, x_w], axis=-1)),
                        jnp.concatenate([wk(1, 2), wk(1, 0)], axis=0),
                        b, out_dtype=jnp.bfloat16)
    p10 = pallas_matmul(flat(jnp.concatenate([x, x_h], axis=-1)),
                        jnp.concatenate([wk(2, 1), wk(0, 1)], axis=0),
                        b, out_dtype=jnp.bfloat16)
    p11 = pallas_matmul(flat(jnp.concatenate([x, x_w, x_h, x_hw], axis=-1)),
                        jnp.concatenate([wk(2, 2), wk(2, 0), wk(0, 2), wk(0, 0)],
                                        axis=0),
                        b, out_dtype=jnp.bfloat16)

    ph = jnp.stack([p00, p01, p10, p11], axis=1)               # (BHW, 4, Cout)
    ph = ph.reshape(B, H, W, 2, 2, Cout).transpose(0, 1, 3, 2, 4, 5)
    return ph.reshape(B, 2 * H, 2 * W, Cout)


def _cubic(t, a=-0.75):
    t = np.abs(t)
    return np.where(t <= 1, (a + 2) * t ** 3 - (a + 3) * t ** 2 + 1,
                    np.where(t < 2, a * t ** 3 - 5 * a * t ** 2 + 8 * a * t - 4 * a,
                             0.0))


def _bicubic_matrix(n_in, n_out):
    """Row-interp matrix reproducing F.interpolate(mode='bicubic', align_corners=True)."""
    M = np.zeros((n_out, n_in), dtype=np.float32)
    scale = (n_in - 1) / (n_out - 1) if n_out > 1 else 0.0
    for i in range(n_out):
        x = i * scale
        x0 = int(np.floor(x))
        f = x - x0
        for j, t in enumerate([1 + f, f, 1 - f, 2 - f]):
            idx = min(max(x0 - 1 + j, 0), n_in - 1)
            M[i, idx] += _cubic(t)
    return M


def bicubic_resize(img, out_h, out_w):
    B, H, W, C = img.shape
    Mr = jnp.asarray(_bicubic_matrix(H, out_h))
    Mc = jnp.asarray(_bicubic_matrix(W, out_w))
    t = jnp.einsum('oh,bhwc->bowc', Mr, img.astype(jnp.float32))
    return jnp.einsum('pw,bowc->bopc', Mc, t)


# ----------------------------------------------------------------------------
# Parameter init (deterministic, PyTorch-like fan-in uniform; PReLU alpha=0.25)
# ----------------------------------------------------------------------------
class KeyGen:
    def __init__(self, seed):
        self.key = jax.random.PRNGKey(seed)

    def __call__(self):
        self.key, k = jax.random.split(self.key)
        return k


def init_linear(key, fin, fout):
    k1, k2 = jax.random.split(key)
    bound = 1.0 / np.sqrt(fin)
    w = jax.random.uniform(k1, (fin, fout), jnp.float32, -bound, bound)
    b = jax.random.uniform(k2, (fout,), jnp.float32, -bound, bound)
    return w, b


def init_conv(key, cout, cin, k):
    k1, k2 = jax.random.split(key)
    bound = 1.0 / np.sqrt(cin * k * k)
    w = jax.random.uniform(k1, (cout, cin, k, k), jnp.float32, -bound, bound)
    b = jax.random.uniform(k2, (cout,), jnp.float32, -bound, bound)
    return w, b


def init_convT(key, cin, cout, k=3):
    k1, k2 = jax.random.split(key)
    bound = 1.0 / np.sqrt(cout * k * k)
    w = jax.random.uniform(k1, (cin, cout, k, k), jnp.float32, -bound, bound)
    b = jax.random.uniform(k2, (cout,), jnp.float32, -bound, bound)
    return w, b


def make_conv_stack(kg, specs):
    layers = []
    for cin, cout in specs:
        w, b = init_conv(kg(), cout, cin, 3)
        a = jnp.full((cout,), 0.25, jnp.float32)   # nn.PReLU(cout) init
        layers.append((w, b, a))
    return layers


def make_ca(kg, C):
    w1, b1 = init_linear(kg(), C, C // 4)
    w2, b2 = init_linear(kg(), C // 4, C)
    return dict(w1=w1, b1=b1, w2=w2, b2=b2)


def init_params(seed, base_h, base_w):
    kg = KeyGen(seed)
    p = {}
    # DeepViT stand-in: patch 32, dim 1024, num_classes 512, num_dim 50
    pw, pb = init_linear(kg(), 32 * 32 * 3, 1024)
    hw_, hb = init_linear(kg(), 1024, 512)
    mw, mb = init_linear(kg(), 512, 50)
    vw, vb = init_linear(kg(), 512, 50)
    p['vit'] = dict(patch_w=pw, patch_b=pb, head_w=hw_, head_b=hb,
                    mulv_w=jnp.concatenate([mw, vw], axis=1),     # fused heads
                    mulv_b=jnp.concatenate([mb, vb], axis=0))
    # ResNet50 front-end stand-in (2-channel conv1) + provided heads
    c1, _ = init_conv(kg(), 64, 2, 7)
    fw, fb = init_linear(kg(), 64, 512)
    rmw, rmb = init_linear(kg(), 512, 50)
    rvw, rvb = init_linear(kg(), 512, 50)
    p['resnet'] = dict(conv1_w=c1, fc_w=fw, fc_b=fb,
                       ln_g=jnp.ones((512,), jnp.float32),
                       ln_b=jnp.zeros((512,), jnp.float32),
                       mulv_w=jnp.concatenate([rmw, rvw], axis=1),
                       mulv_b=jnp.concatenate([rmb, rvb], axis=0))
    # Decoder (original spec: base 16x16 -> fc2=768; parametrised here)
    d = {}
    d['fc1_w'], d['fc1_b'] = init_linear(kg(), 100, 512)
    d['fc2_w'], d['fc2_b'] = init_linear(kg(), 512, 3 * base_h * base_w)
    d['layer1'] = make_conv_stack(kg, [(6, 32), (32, 64), (64, 64)])
    d['attn1'] = make_ca(kg, 64)
    d['up1_w'], d['up1_b'] = init_convT(kg(), 64, 64)
    d['layer2'] = make_conv_stack(kg, [(67, 256), (256, 512)])
    d['attn2'] = make_ca(kg, 512)
    d['up2_w'], d['up2_b'] = init_convT(kg(), 512, 512)
    d['layer3'] = make_conv_stack(kg, [(515, 256), (256, 128)])
    d['attn3'] = make_ca(kg, 128)
    d['up3_w'], d['up3_b'] = init_convT(kg(), 128, 128)
    d['layer4'] = make_conv_stack(kg, [(131, 64), (64, 32)])
    d['attn4'] = make_ca(kg, 32)
    d['up4_w'], d['up4_b'] = init_convT(kg(), 32, 32)
    d['layer5'] = make_conv_stack(kg, [(35, 128), (128, 256), (256, 3)])
    p['dec'] = d
    return p


# ----------------------------------------------------------------------------
# Model forward
# ----------------------------------------------------------------------------
def run_conv_stack(x, layers, last_act="prelu", residual=None):
    n = len(layers)
    for i, (w, b, a) in enumerate(layers):
        last = (i == n - 1)
        if last and last_act == "tanh_res":
            x = conv2d(x, w, b, act="tanh", residual=residual,
                       out_dtype=jnp.float32)
        elif last and last_act != "prelu":
            x = conv2d(x, w, b, act=last_act, out_dtype=jnp.float32)
        else:
            x = conv2d(x, w, b, act="prelu", alpha=a)
    return x


def vit_encoder(x_nchw, p):
    # TODO(synk): DeepViT's 6-layer re-attention transformer body is an external
    # dependency (vit_pytorch) not included in the source; only patch-embed +
    # mean-pool + the mu/log_var heads (num_dim=50) are reproduced here.
    B, C, H, W = x_nchw.shape
    ph, pw_ = H // 32, W // 32
    xp = x_nchw.reshape(B, 3, ph, 32, pw_, 32).transpose(0, 2, 4, 3, 5, 1)
    xp = xp.reshape(B * ph * pw_, 32 * 32 * 3).astype(jnp.bfloat16)
    tok = pallas_matmul(xp, p['patch_w'], p['patch_b'],
                        out_dtype=jnp.bfloat16).reshape(B, ph * pw_, 1024)
    pooled = pallas_gap(tok).reshape(B, 1024)
    h = pallas_matmul(pooled, p['head_w'], p['head_b'], out_dtype=jnp.bfloat16)
    mulv = pallas_matmul(h, p['mulv_w'], p['mulv_b'],
                         out_dtype=jnp.float32)    # latent heads stay f32
    return mulv[:, :50], mulv[:, 50:]


def resnet_encoder(sar_nchw, p):
    # TODO(synk): full torchvision ResNet-50 body (BN + bottleneck stages, 2048-d
    # features) is external; simplified to conv1(2->64,7x7,s2) + ReLU + GAP + fc.
    x = jnp.transpose(sar_nchw, (0, 2, 3, 1))
    x = conv2d(x, p['conv1_w'], jnp.zeros((64,), jnp.float32),
               stride=2, pad=3, act="relu", out_dtype=jnp.bfloat16)
    B, H, W, C = x.shape
    feat = pallas_gap(x.reshape(B, H * W, C)).reshape(B, C)
    h = pallas_matmul(feat, p['fc_w'], p['fc_b'], out_dtype=jnp.float32)
    h = pallas_layernorm(h, p['ln_g'], p['ln_b'])
    mulv = pallas_matmul(h, p['mulv_w'], p['mulv_b'], out_dtype=jnp.float32)
    return mulv[:, :50], mulv[:, 50:]


def decoder_forward(img_nchw, mean, log_var, p, eps):
    B, _, H, W = img_nchw.shape
    bh, bw = H // 16, W // 16
    img = jnp.transpose(img_nchw, (0, 2, 3, 1)).astype(jnp.float32)   # NHWC (residual)
    img_bf = img.astype(jnp.bfloat16)
    z = pallas_reparam(mean, log_var, eps)                 # mean + eps*exp(var/2)
    x = pallas_matmul(z, p['fc1_w'], p['fc1_b'], out_dtype=jnp.bfloat16)
    x = pallas_matmul(x, p['fc2_w'], p['fc2_b'], out_dtype=jnp.bfloat16)
    hidden_map = x.reshape(B, 3, bh, bw)                   # NCHW view as in PyTorch
    x = jnp.transpose(hidden_map, (0, 2, 3, 1))            # (B,bh,bw,3)

    cond = bicubic_resize(img, H // 16, W // 16).astype(jnp.bfloat16)
    x = jnp.concatenate([x, cond], axis=-1)
    x = run_conv_stack(x, p['layer1'])
    x = ca_layer(x, p['attn1'])
    x = conv_transpose2d(x, p['up1_w'], p['up1_b'])

    cond = bicubic_resize(img, H // 8, W // 8).astype(jnp.bfloat16)
    x = jnp.concatenate([x, cond], axis=-1)
    x = run_conv_stack(x, p['layer2'])
    x = ca_layer(x, p['attn2'])
    x = conv_transpose2d(x, p['up2_w'], p['up2_b'])

    cond = bicubic_resize(img, H // 4, W // 4).astype(jnp.bfloat16)
    x = jnp.concatenate([x, cond], axis=-1)
    x = run_conv_stack(x, p['layer3'])
    x = ca_layer(x, p['attn3'])
    x = conv_transpose2d(x, p['up3_w'], p['up3_b'])

    cond = bicubic_resize(img, H // 2, W // 2).astype(jnp.bfloat16)
    x = jnp.concatenate([x, cond], axis=-1)
    x = run_conv_stack(x, p['layer4'])
    x = ca_layer(x, p['attn4'])
    x = conv_transpose2d(x, p['up4_w'], p['up4_b'])

    x = jnp.concatenate([x, img_bf], axis=-1)
    # Last conv + tanh + residual add (output = x + tanh(conv(...))) fused into
    # the GEMM epilogue -> no separate full-resolution add kernel.
    out = run_conv_stack(x, p['layer5'], last_act="tanh_res", residual=img)
    return out, hidden_map


def vae_forward(x_nchw, sar_nchw, params, eps):
    mu_x, lv_x = vit_encoder(x_nchw, params['vit'])
    mu_s, lv_s = resnet_encoder(sar_nchw, params['resnet'])
    mean = jnp.concatenate([mu_x, mu_s], axis=1)           # (B,100)
    log_var = jnp.concatenate([lv_x, lv_s], axis=1)        # (B,100)
    out_nhwc, _hidden = decoder_forward(x_nchw, mean, log_var, params['dec'], eps)
    out_nchw = jnp.transpose(out_nhwc, (0, 3, 1, 2))
    return out_nchw, mean, log_var


# ----------------------------------------------------------------------------
if __name__ == "__main__":
    key = jax.random.PRNGKey(0)
    kx, ks, ke = jax.random.split(key, 3)
    # Small test shapes: 64x64 image -> 4x4 latent base map (original spec uses
    # 256x256 with fc2=768; decoder latent map is parametrised to keep the
    # TPU compile / run check fast).
    H = W = 64
    x = jax.random.normal(kx, (1, 3, H, W), jnp.float32)
    sar = jax.random.normal(ks, (1, 2, 32, 32), jnp.float32)
    eps = jax.random.normal(ke, (1, 100), jnp.float32)     # torch.randn_like(std)

    params = init_params(0, H // 16, W // 16)
    out, mean, log_var = vae_forward(x, sar, params, eps)
    jax.block_until_ready((out, mean, log_var))

    assert out.shape == (1, 3, H, W)
    assert mean.shape == (1, 100) and log_var.shape == (1, 100)
    assert bool(jnp.all(jnp.isfinite(out)))
    print("KERNEL_OK")
</pallas_src>

<mosaic_0001>
module attributes {stable_mosaic.version = 11 : i64} {
  func.func @_mm_kernel(%arg0: i32, %arg1: i32, %arg2: i32, %arg3: memref<8x512xbf16, #tpu.memory_space<vmem>>, %arg4: memref<512x256xbf16, #tpu.memory_space<vmem>>, %arg5: memref<1x256xf32, #tpu.memory_space<vmem>>, %arg6: memref<8x256xbf16, #tpu.memory_space<vmem>>, %arg7: memref<8x256xf32, #tpu.memory_space<vmem>>) attributes {dimension_semantics = [#tpu.dimension_semantics<parallel>, #tpu.dimension_semantics<parallel>, #tpu.dimension_semantics<arbitrary>], iteration_bounds = array<i64: 1, 4, 6>, scalar_prefetch = 0 : i64, scratch_operands = 1 : i64, tpu.core_type = #tpu.core_type<tc>, window_params = [{transform_indices = @transform_0, window_bounds = array<i64: 8, 512>}, {transform_indices = @transform_1, window_bounds = array<i64: 512, 256>}, {transform_indices = @transform_2, window_bounds = array<i64: 1, 256>}, {transform_indices = @transform_3, window_bounds = array<i64: 8, 256>}]} {
    %c0_i32 = arith.constant 0 : i32
    %0 = arith.cmpi eq, %arg2, %c0_i32 : i32
    %1 = arith.extui %0 : i1 to i32
    %c0_i32_0 = arith.constant 0 : i32
    %2 = arith.cmpi ne, %1, %c0_i32_0 : i32
    scf.if %2 {
      %cst_9 = arith.constant 0.000000e+00 : f32
      %12 = vector.broadcast %cst_9 : f32 to vector<8x256xf32>
      %c0_10 = arith.constant 0 : index
      %c0_11 = arith.constant 0 : index
      %13 = vector.load %arg7[%c0_10, %c0_11] : memref<8x256xf32, #tpu.memory_space<vmem>>, vector<8x256xf32>
      tpu.vector_store %arg7[%c0_10, %c0_11], %12 {strides = array<i32>} : memref<8x256xf32, #tpu.memory_space<vmem>>, vector<8x256xf32>,
    } else {
    }
    %c0 = arith.constant 0 : index
    %c0_1 = arith.constant 0 : index
    %3 = vector.load %arg7[%c0, %c0_1] : memref<8x256xf32, #tpu.memory_space<vmem>>, vector<8x256xf32>
    %c0_2 = arith.constant 0 : index
    %c0_3 = arith.constant 0 : index
    %4 = vector.load %arg3[%c0_2, %c0_3] : memref<8x512xbf16, #tpu.memory_space<vmem>>, vector<8x512xbf16>
    %c0_4 = arith.constant 0 : index
    %c0_5 = arith.constant 0 : index
    %5 = vector.load %arg4[%c0_4, %c0_5] : memref<512x256xbf16, #tpu.memory_space<vmem>>, vector<512x256xbf16>
    %cst = arith.constant dense<0.000000e+00> : vector<8x256xf32>
    %6 = tpu.matmul %4, %5, %cst {dimension_numbers = #tpu.dot_dimension_numbers<[1], [0], [0], [1], [0, 0, 1, 1], [], []>} : vector<8x512xbf16>, vector<512x256xbf16>, vector<8x256xf32> -> vector<8x256xf32>
    %7 = arith.addf %3, %6 : vector<8x256xf32>
    %c0_6 = arith.constant 0 : index
    %c0_7 = arith.constant 0 : index
    %8 = vector.load %arg7[%c0_6, %c0_7] : memref<8x256xf32, #tpu.memory_space<vmem>>, vector<8x256xf32>
    tpu.vector_store %arg7[%c0_6, %c0_7], %7 {strides = array<i32>} : memref<8x256xf32, #tpu.memory_space<vmem>>, vector<8x256xf32>,
    %c5_i32 = arith.constant 5 : i32
    %9 = arith.cmpi eq, %arg2, %c5_i32 : i32
    %10 = arith.extui %9 : i1 to i32
    %c0_i32_8 = arith.constant 0 : i32
    %11 = arith.cmpi ne, %10, %c0_i32_8 : i32
    scf.if %11 {
      %c0_9 = arith.constant 0 : index
      %c0_10 = arith.constant 0 : index
      %12 = vector.load %arg7[%c0_9, %c0_10] : memref<8x256xf32, #tpu.memory_space<vmem>>, vector<8x256xf32>
      %c0_11 = arith.constant 0 : index
      %c0_12 = arith.constant 0 : index
      %13 = vector.load %arg5[%c0_11, %c0_12] : memref<1x256xf32, #tpu.memory_space<vmem>>, vector<1x256xf32>
      %14 = vector.broadcast %13 : vector<1x256xf32> to vector<8x256xf32>
      %15 = arith.addf %12, %14 : vector<8x256xf32>
      %16 = arith.truncf %15 : vector<8x256xf32> to vector<8x256xbf16>
      %c0_13 = arith.constant 0 : index
      %c0_14 = arith.constant 0 : index
      %17 = vector.load %arg6[%c0_13, %c0_14] : memref<8x256xbf16, #tpu.memory_space<vmem>>, vector<8x256xbf16>
      tpu.vector_store %arg6[%c0_13, %c0_14], %16 {strides = array<i32>} : memref<8x256xbf16, #tpu.memory_space<vmem>>, vector<8x256xbf16>,
    } else {
    }
    return
  }
  func.func @transform_0(%arg0: i32, %arg1: i32, %arg2: i32) -> (i32, i32) {
    %c0_i32 = arith.constant 0 : i32
    return %arg0, %arg2 : i32, i32
  }
  func.func @transform_1(%arg0: i32, %arg1: i32, %arg2: i32) -> (i32, i32) {
    %c0_i32 = arith.constant 0 : i32
    return %arg2, %arg1 : i32, i32
  }
  func.func @transform_2(%arg0: i32, %arg1: i32, %arg2: i32) -> (i32, i32) {
    %c0_i32 = arith.constant 0 : i32
    %c0_i32_0 = arith.constant 0 : i32
    return %c0_i32, %arg1 : i32, i32
  }
  func.func @transform_3(%arg0: i32, %arg1: i32, %arg2: i32) -> (i32, i32) {
    %c0_i32 = arith.constant 0 : i32
    return %arg0, %arg1 : i32, i32
  }
}

</mosaic_0001>

<llo_original>
// kernel: tpu_custom_call.1
$region0: #{tpu_custom_call.1}
  #allocation0 [shape = 'u32[]', space=smem, size = 0x4, offset = 0x4, fixed_abs, tag = 'smem constant byte address 0x4 - core index']
  #allocation1 [shape = 'u32[144,128]{1,0:T(1,128)}', space=vmem, size = 0x12000, scoped, tag = 'internal scratch']
  #allocation2 [shape = 'f32[8,256]{1,0:T(8,128)}', space=vmem, size = 0x2000, scoped, tag = 'scratch operand']
  %s0 = inlined_call_operand.hbm [shape: bf16[8,3072], index: 0, kind: input, shape index: {}]
  %s1 = inlined_call_operand.hbm [shape: bf16[3072,1024], index: 1, kind: input, shape index: {}]
  %s2 = inlined_call_operand.hbm [shape: f32[1,1024], index: 2, kind: input, shape index: {}]
  %s3 = inlined_call_operand.hbm [shape: bf16[8,1024], index: 3, kind: output, shape index: {}]
  %s4 = sld [smem:[#allocation0]]
  $region65: #{tpu_custom_call.1} parent=0
    _
  %s6 = ssub.s32 1, %s4
  %s7 = scalar_select 0, %s6, %s4
  $region1: #{tpu_custom_call.1} parent=0
    #allocation3 [shape = 'u8[16384]{0}', space=vmem, size = 0x4000, scoped, tag = 'input window, operand 0']
    #allocation4 [shape = 's32[2]{0}', space=sflag, size = 0x8, scoped, tag = 'scoped memory for tpu_custom_call.1']
    #allocation5 [shape = 's32[2]{0}', space=sflag, size = 0x8, scoped, tag = 'scoped memory for tpu_custom_call.1']
    #allocation6 [shape = 'u8[524288]{0}', space=vmem, size = 0x80000, scoped, tag = 'input window, operand 1']
    #allocation7 [shape = 's32[2]{0}', space=sflag, size = 0x8, scoped, tag = 'scoped memory for tpu_custom_call.1']
    #allocation8 [shape = 'u8[2048]{0}', space=vmem, size = 0x800, scoped, tag = 'input window, operand 2']
    #allocation9 [shape = 'u8[8192]{0}', space=vmem, size = 0x2000, scoped, tag = 'output window, operand 0']
    %8 = vsyncpa [#allocation4], 0
    %s9 = scalar_lea.sflag [#allocation4], 1
    %10 = vsyncpa %s9, 0
    %11 = vsyncpa [#allocation7], 0
    %s12 = scalar_lea.sflag [#allocation7], 1
    %13 = vsyncpa %s12, 0
    %14 = vsyncpa [#allocation5], 0
    %s15 = scalar_lea.sflag [#allocation5], 1
    %16 = vsyncpa %s15, 0
    loop: start=0, step=1, limit=26
    $region2: #{tpu_custom_call.1} parent=1 // loop_pre_header
      _
    $region3: #{tpu_custom_call.1} parent=1 // loop_header
      %s18 = sphi 0, %s22
      %p19 = scmp.ge.s32.totalorder %s18, 26
      %s25 = sphi 0, %s44
      %s26 = sphi 0, %s40
      %s27 = sphi 0, %s36
      %s28 = sphi 0, %s25
      %s29 = sphi 0, %s26
      %s30 = sphi 0, %s27
      %s31 = sphi 0, %s28
      %s32 = sphi 0, %s29
      %s33 = sphi 0, %s30
      %s49 = sphi 0, %s51
      %s52 = sphi 0, %s49
      %s53 = sphi 0, %s52
      %s69 = sphi 0, %s53
      %s77 = sphi 0, %s79
      %s80 = sphi 0, %s77
      %s81 = sphi 0, %s80
      %s97 = sphi 0, %s81
      %s103 = sphi 0, %s105
      %s106 = sphi 0, %s103
      %s107 = sphi 0, %s106
      %s123 = sphi 0, %s107
      %s131 = sphi 0, %s133
      %s134 = sphi 0, %s131
      %s135 = sphi 0, %s134
      %s151 = sphi 0, %s135
    $region4: #{tpu_custom_call.1} parent=1 // loop_header_branch
      %21 = sbr.rel (%p19) target = $region8
    $region5: #{tpu_custom_call.1} parent=1 // loop_body
      %s23 = ssub.s32 %s18, 1
      %s24 = ssub.s32 %s18, 2
      %s34 = sadd.s32 1, %s27
      %p35 = scmp.ge.s32.totalorder %s34, 6
      %s36 = scalar_select %p35, 0, %s34
      %s37 = sadd.s32 1, %s26
      %s38 = scalar_select %p35, %s37, %s26
      %p39 = scmp.ge.s32.totalorder %s38, 4
      %s40 = scalar_select %p39, 0, %s38
      %s41 = sadd.s32 1, %s25
      %s42 = scalar_select %p39, %s41, %s25
      %p43 = scmp.ge.s32.totalorder %s42, 1
      %s44 = scalar_select %p43, 0, %s42
      %s45 = ssub.s32 %s25, %s44
      %s46 = ssub.s32 %s27, %s36
      %s47 = sor.u32 %s45, %s46
      %p48 = scmp.eq.s32.totalorder %s47, 0
      %s50 = sadd.s32 %s49, 1
      %s51 = scalar_select %p48, %s49, %s50
      %p54 = pneg %p48
      %p55 = scmp.eq.s32.totalorder %s18, 23
      %p56 = por %p54, %p55
      %p57 = scmp.ne.s32.totalorder %s49, %s52
      %p58 = scmp.eq.s32.totalorder %s18, 0
      %p59 = por %p57, %p58
      %p60 = scmp.ne.s32.totalorder %s49, %s52
      %p61 = scmp.eq.s32.totalorder %s23, 23
      %p62 = por %p60, %p61
      %p63 = scmp.ne.s32.totalorder %s52, %s53
      %p64 = scmp.eq.s32.totalorder %s23, 0
      %p65 = por %p63, %p64
      %p66 = scmp.ne.s32.totalorder %s52, %s53
      %p67 = scmp.eq.s32.totalorder %s24, 23
      %p68 = por %p66, %p67
      %p70 = scmp.ne.s32.totalorder %s53, %s69
      %p71 = scmp.eq.s32.totalorder %s24, 0
      %p72 = por %p70, %p71
      %s73 = ssub.s32 %s27, %s36
      %s74 = ssub.s32 %s26, %s40
      %s75 = sor.u32 %s73, %s74
      %p76 = scmp.eq.s32.totalorder %s75, 0
      %s78 = sadd.s32 %s77, 1
      %s79 = scalar_select %p76, %s77, %s78
      %p82 = pneg %p76
      %p83 = scmp.eq.s32.totalorder %s18, 23
      %p84 = por %p82, %p83
      %p85 = scmp.ne.s32.totalorder %s77, %s80
      %p86 = scmp.eq.s32.totalorder %s18, 0
      %p87 = por %p85, %p86
      %p88 = scmp.ne.s32.totalorder %s77, %s80
      %p89 = scmp.eq.s32.totalorder %s23, 23
      %p90 = por %p88, %p89
      %p91 = scmp.ne.s32.totalorder %s80, %s81
      %p92 = scmp.eq.s32.totalorder %s23, 0
      %p93 = por %p91, %p92
      %p94 = scmp.ne.s32.totalorder %s80, %s81
      %p95 = scmp.eq.s32.totalorder %s24, 23
      %p96 = por %p94, %p95
      %p98 = scmp.ne.s32.totalorder %s81, %s97
      %p99 = scmp.eq.s32.totalorder %s24, 0
      %p100 = por %p98, %p99
      %s101 = ssub.s32 %s26, %s40
      %p102 = scmp.eq.s32.totalorder %s101, 0
      %s104 = sadd.s32 %s103, 1
      %s105 = scalar_select %p102, %s103, %s104
      %p108 = pneg %p102
      %p109 = scmp.eq.s32.totalorder %s18, 23
      %p110 = por %p108, %p109
      %p111 = scmp.ne.s32.totalorder %s103, %s106
      %p112 = scmp.eq.s32.totalorder %s18, 0
      %p113 = por %p111, %p112
      %p114 = scmp.ne.s32.totalorder %s103, %s106
      %p115 = scmp.eq.s32.totalorder %s23, 23
      %p116 = por %p114, %p115
      %p117 = scmp.ne.s32.totalorder %s106, %s107
      %p118 = scmp.eq.s32.totalorder %s23, 0
      %p119 = por %p117, %p118
      %p120 = scmp.ne.s32.totalorder %s106, %s107
      %p121 = scmp.eq.s32.totalorder %s24, 23
      %p122 = por %p120, %p121
      %p124 = scmp.ne.s32.totalorder %s107, %s123
      %p125 = scmp.eq.s32.totalorder %s24, 0
      %p126 = por %p124, %p125
      %s127 = ssub.s32 %s25, %s44
      %s128 = ssub.s32 %s26, %s40
      %s129 = sor.u32 %s127, %s128
      %p130 = scmp.eq.s32.totalorder %s129, 0
      %s132 = sadd.s32 %s131, 1
      %s133 = scalar_select %p130, %s131, %s132
      %p136 = pneg %p130
      %p137 = scmp.eq.s32.totalorder %s18, 23
      %p138 = por %p136, %p137
      %p139 = scmp.ne.s32.totalorder %s131, %s134
      %p140 = scmp.eq.s32.totalorder %s18, 0
      %p141 = por %p139, %p140
      %p142 = scmp.ne.s32.totalorder %s131, %s134
      %p143 = scmp.eq.s32.totalorder %s23, 23
      %p144 = por %p142, %p143
      %p145 = scmp.ne.s32.totalorder %s134, %s135
      %p146 = scmp.eq.s32.totalorder %s23, 0
      %p147 = por %p145, %p146
      %p148 = scmp.ne.s32.totalorder %s134, %s135
      %p149 = scmp.eq.s32.totalorder %s24, 23
      %p150 = por %p148, %p149
      %p152 = scmp.ne.s32.totalorder %s135, %s151
      %p153 = scmp.eq.s32.totalorder %s24, 0
      %p154 = por %p152, %p153
      %p155 = scmp.le.s32.totalorder 1, %s18
      %p156 = scmp.lt.s32.totalorder %s18, 25
      %p157 = pnand %p155, %p156
      %p158 = pneg %p157
      // Predicated region
      $region9: #{tpu_custom_call.1} parent=5 // pred_check
        _
      $region10: #{tpu_custom_call.1} parent=5 // pred_check_branch
        %160 = sbr.rel (%p157) target = $region12
      $region11: #{tpu_custom_call.1} parent=5 // pred_region
        %s161 = ssub.s32 %s18, 1
      $region12: #{tpu_custom_call.1} parent=5 // pred_fallthru
        _
      %p162 = scmp.lt.s32.totalorder %s18, 24
      // Predicated region
      $region13: #{tpu_custom_call.1} parent=5 // pred_check
        %p163 = pneg %p162
      $region14: #{tpu_custom_call.1} parent=5 // pred_check_branch
        %165 = sbr.rel (%p163) target = $region16
      $region15: #{tpu_custom_call.1} parent=5 // pred_region
        // Predicated region
        $region17: #{tpu_custom_call.1} parent=15 // pred_check
          %p166 = pneg %p59
        $region18: #{tpu_custom_call.1} parent=15 // pred_check_branch
          %168 = sbr.rel (%p166) target = $region20
        $region19: #{tpu_custom_call.1} parent=15 // pred_region
          %s169 = sand.u32 %s49, 1
          %s170 = scalar_lea.sflag [#allocation4], %s169
          %s171 = sand.u32 %s49, 1
          %s172 = smul.addr %s171, 16
          %s173 = scalar_lea.vmem [#allocation3], %s172
          %s174 = smul.u32 4, %s27
          %s176 = ssub.s32 256, 256
          %177 = vsyncadd %s170, %s176
          %s178 = smul.addr %s25, 24
          %s179 = sadd.s32 %s174, %s178
          %s180 = smul.addr %s179, 64
          %s181 = scalar_lea.hbm %s0, %s180
          %s183 = sshll.u32 %s173, 4
          %s184 = int_to_ptr.vmem [resolvable:$true] %s183
          %186 = dma.hbm_to_vmem [thread:$0]  %s181, 256, %s184, %s170
        $region20: #{tpu_custom_call.1} parent=15 // pred_fallthru
          _
        // Predicated region
        $region21: #{tpu_custom_call.1} parent=15 // pred_check
          %p187 = pneg %p87
        $region22: #{tpu_custom_call.1} parent=15 // pred_check_branch
          %189 = sbr.rel (%p187) target = $region24
        $region23: #{tpu_custom_call.1} parent=15 // pred_region
          %s190 = sand.u32 %s18, 1
          %s191 = scalar_lea.sflag [#allocation7], %s190
          %s192 = sand.u32 %s77, 1
          %s193 = smul.addr %s192, 512
          %s194 = scalar_lea.vmem [#allocation6], %s193
          %s195 = smul.u32 64, %s27
          %s196 = smul.u32 2, %s26
          %s198 = ssub.s32 8192, 8192
          %199 = vsyncadd %s191, %s198
          %s200 = smul.addr %s195, 8
          %s201 = sadd.s32 %s196, %s200
          %s202 = smul.addr %s201, 64
          %s203 = scalar_lea.hbm %s1, %s202
          %s204 = sshll.u32 %s194, 4
          %s205 = int_to_ptr.vmem [resolvable:$true] %s204
          %210 = dma.hbm_to_vmem [thread:$0]  %s203, 8192, %s205, %s191, 512, 128, 8
        $region24: #{tpu_custom_call.1} parent=15 // pred_fallthru
          _
        // Predicated region
        $region25: #{tpu_custom_call.1} parent=15 // pred_check
          %p211 = pneg %p113
        $region26: #{tpu_custom_call.1} parent=15 // pred_check_branch
          %213 = sbr.rel (%p211) target = $region28
        $region27: #{tpu_custom_call.1} parent=15 // pred_region
          %s214 = sand.u32 %s18, 1
          %s215 = scalar_lea.sflag [#allocation7], %s214
          %s216 = sand.u32 %s103, 1
          %s217 = smul.addr %s216, 2
          %s218 = scalar_lea.vmem [#allocation8], %s217
          %s219 = smul.u32 2, %s26
          %s221 = ssub.s32 32, 32
          %222 = vsyncadd %s215, %s221
          %s223 = smul.addr %s219, 16
          %s224 = scalar_lea.hbm %s2, %s223
          %s226 = sshll.u32 %s218, 4
          %s227 = int_to_ptr.vmem [resolvable:$true] %s226
          %229 = dma.hbm_to_vmem [thread:$0]  %s224, 32, %s227, %s215
        $region28: #{tpu_custom_call.1} parent=15 // pred_fallthru
          _
      $region16: #{tpu_custom_call.1} parent=5 // pred_fallthru
        _
      %p230 = scmp.le.s32.totalorder 1, %s18
      %p231 = scmp.lt.s32.totalorder %s18, 25
      %p232 = pnand %p230, %p231
      %p233 = pneg %p232
      // Predicated region
      $region29: #{tpu_custom_call.1} parent=5 // pred_check
        _
      $region30: #{tpu_custom_call.1} parent=5 // pred_check_branch
        %235 = sbr.rel (%p232) target = $region32
      $region31: #{tpu_custom_call.1} parent=5 // pred_region
        %s236 = ssub.s32 %s18, 1
        %s237 = sand.u32 %s52, 1
        %s238 = scalar_lea.sflag [#allocation4], %s237
        %s239 = sand.u32 %s52, 1
        %s240 = smul.addr %s239, 16
        %s241 = scalar_lea.vmem [#allocation3], %s240
        // Predicated region
        $region33: #{tpu_custom_call.1} parent=31 // pred_check
          %p242 = pneg %p65
        $region34: #{tpu_custom_call.1} parent=31 // pred_check_branch
          %244 = sbr.rel (%p242) target = $region36
        $region35: #{tpu_custom_call.1} parent=31 // pred_region
          %245 = dma.done %s238, 256
        $region36: #{tpu_custom_call.1} parent=31 // pred_fallthru
          _
        %s246 = sand.u32 %s23, 1
        %s247 = scalar_lea.sflag [#allocation7], %s246
        %s248 = sand.u32 %s80, 1
        %s249 = smul.addr %s248, 512
        %s250 = scalar_lea.vmem [#allocation6], %s249
        // Predicated region
        $region37: #{tpu_custom_call.1} parent=31 // pred_check
          %p251 = pneg %p93
        $region38: #{tpu_custom_call.1} parent=31 // pred_check_branch
          %253 = sbr.rel (%p251) target = $region40
        $region39: #{tpu_custom_call.1} parent=31 // pred_region
          %254 = dma.done %s247, 8192
        $region40: #{tpu_custom_call.1} parent=31 // pred_fallthru
          _
        %s255 = sand.u32 %s23, 1
        %s256 = scalar_lea.sflag [#allocation7], %s255
        %s257 = sand.u32 %s106, 1
        %s258 = smul.addr %s257, 2
        %s259 = scalar_lea.vmem [#allocation8], %s258
        // Predicated region
        $region41: #{tpu_custom_call.1} parent=31 // pred_check
          %p260 = pneg %p119
        $region42: #{tpu_custom_call.1} parent=31 // pred_check_branch
          %262 = sbr.rel (%p260) target = $region44
        $region43: #{tpu_custom_call.1} parent=31 // pred_region
          %263 = dma.done %s256, 32
        $region44: #{tpu_custom_call.1} parent=31 // pred_fallthru
          _
        %s264 = sand.u32 %s52, 1
        %s265 = scalar_lea.sflag [#allocation4], %s264
        %s266 = sand.u32 %s52, 1
        %s267 = smul.addr %s266, 16
        %s268 = scalar_lea.vmem [#allocation3], %s267
        %p269 = pneg %p65
        %p270 = pneg %p62
        %s271 = sand.u32 %s23, 1
        %s272 = scalar_lea.sflag [#allocation7], %s271
        %s273 = sand.u32 %s80, 1
        %s274 = smul.addr %s273, 512
        %s275 = scalar_lea.vmem [#allocation6], %s274
        %p276 = pneg %p93
        %p277 = pneg %p90
        %s278 = sand.u32 %s23, 1
        %s279 = scalar_lea.sflag [#allocation7], %s278
        %s280 = sand.u32 %s106, 1
        %s281 = smul.addr %s280, 2
        %s282 = scalar_lea.vmem [#allocation8], %s281
        %p283 = pneg %p119
        %p284 = pneg %p116
        %p285 = pneg %p147
        %p286 = pneg %p144
        %s287 = sand.u32 %s134, 1
        %s288 = scalar_lea.sflag [#allocation5], %s287
        %s289 = sand.u32 %s134, 1
        %s290 = smul.addr %s289, 8
        %s291 = scalar_lea.vmem [#allocation9], %s290
        %s292 = smul.u32 4, %s30
        %s293 = smul.u32 64, %s30
        %s294 = smul.u32 2, %s29
        %s295 = smul.u32 2, %s29
        %s296 = smul.u32 2, %s29
        %p297 = scmp.eq.s32.totalorder %s30, 0
        // Predicated region
        $region45: #{tpu_custom_call.1} parent=31 // pred_check
          %p298 = pneg %p297
        $region46: #{tpu_custom_call.1} parent=31 // pred_check_branch
          %300 = sbr.rel (%p298) target = $region48
        $region47: #{tpu_custom_call.1} parent=31 // pred_region
          %301 = vst [vmem:[#allocation2] sm:$0xff] 0.0
          %302 = vst [vmem:[#allocation2 + $0x8] sm:$0xff] 0.0
        $region48: #{tpu_custom_call.1} parent=31 // pred_fallthru
          _
        %v303 = vld [vmem:[#allocation2] sm:$0xff]
        %v304 = vld [vmem:[#allocation2 + $0x8] sm:$0xff]
        %v305 = vld [vmem:[%s241] sm:$0xff]
        %v306 = vld [vmem:[%s241 + $0x8] sm:$0xff]
        %v307 = vld [vmem:[%s250] sm:$0xff]
        %v308 = vld [vmem:[%s250 + $0x8] sm:$0xff]
        %v309 = vld [vmem:[%s250 + $0x10] sm:$0xff]
        %v310 = vld [vmem:[%s250 + $0x18] sm:$0xff]
        %v311 = vld [vmem:[%s250 + $0x20] sm:$0xff]
        %v312 = vld [vmem:[%s250 + $0x28] sm:$0xff]
        %v313 = vld [vmem:[%s250 + $0x30] sm:$0xff]
        %v314 = vld [vmem:[%s250 + $0x38] sm:$0xff]
        %v315 = vld [vmem:[%s250 + $0x40] sm:$0xff]
        %v316 = vld [vmem:[%s250 + $0x48] sm:$0xff]
        %v317 = vld [vmem:[%s250 + $0x50] sm:$0xff]
        %v318 = vld [vmem:[%s250 + $0x58] sm:$0xff]
        %v319 = vld [vmem:[%s250 + $0x60] sm:$0xff]
        %v320 = vld [vmem:[%s250 + $0x68] sm:$0xff]
        %v321 = vld [vmem:[%s250 + $0x70] sm:$0xff]
        %v322 = vld [vmem:[%s250 + $0x78] sm:$0xff]
        %v323 = vld [vmem:[%s250 + $0x80] sm:$0xff]
        %v324 = vld [vmem:[%s250 + $0x88] sm:$0xff]
        %v325 = vld [vmem:[%s250 + $0x90] sm:$0xff]
        %v326 = vld [vmem:[%s250 + $0x98] sm:$0xff]
        %v327 = vld [vmem:[%s250 + $0xa0] sm:$0xff]
        %v328 = vld [vmem:[%s250 + $0xa8] sm:$0xff]
        %v329 = vld [vmem:[%s250 + $0xb0] sm:$0xff]
        %v330 = vld [vmem:[%s250 + $0xb8] sm:$0xff]
        %v331 = vld [vmem:[%s250 + $0xc0] sm:$0xff]
        %v332 = vld [vmem:[%s250 + $0xc8] sm:$0xff]
        %v333 = vld [vmem:[%s250 + $0xd0] sm:$0xff]
        %v334 = vld [vmem:[%s250 + $0xd8] sm:$0xff]
        %v335 = vld [vmem:[%s250 + $0xe0] sm:$0xff]
        %v336 = vld [vmem:[%s250 + $0xe8] sm:$0xff]
        %v337 = vld [vmem:[%s250 + $0xf0] sm:$0xff]
        %v338 = vld [vmem:[%s250 + $0xf8] sm:$0xff]
        %v339 = vld [vmem:[%s250 + $0x100] sm:$0xff]
        %v340 = vld [vmem:[%s250 + $0x108] sm:$0xff]
        %v341 = vld [vmem:[%s250 + $0x110] sm:$0xff]
        %v342 = vld [vmem:[%s250 + $0x118] sm:$0xff]
        %v343 = vld [vmem:[%s250 + $0x120] sm:$0xff]
        %v344 = vld [vmem:[%s250 + $0x128] sm:$0xff]
        %v345 = vld [vmem:[%s250 + $0x130] sm:$0xff]
        %v346 = vld [vmem:[%s250 + $0x138] sm:$0xff]
        %v347 = vld [vmem:[%s250 + $0x140] sm:$0xff]
        %v348 = vld [vmem:[%s250 + $0x148] sm:$0xff]
        %v349 = vld [vmem:[%s250 + $0x150] sm:$0xff]
        %v350 = vld [vmem:[%s250 + $0x158] sm:$0xff]
        %v351 = vld [vmem:[%s250 + $0x160] sm:$0xff]
        %v352 = vld [vmem:[%s250 + $0x168] sm:$0xff]
        %v353 = vld [vmem:[%s250 + $0x170] sm:$0xff]
        %v354 = vld [vmem:[%s250 + $0x178] sm:$0xff]
        %v355 = vld [vmem:[%s250 + $0x180] sm:$0xff]
        %v356 = vld [vmem:[%s250 + $0x188] sm:$0xff]
        %v357 = vld [vmem:[%s250 + $0x190] sm:$0xff]
        %v358 = vld [vmem:[%s250 + $0x198] sm:$0xff]
        %v359 = vld [vmem:[%s250 + $0x1a0] sm:$0xff]
        %v360 = vld [vmem:[%s250 + $0x1a8] sm:$0xff]
        %v361 = vld [vmem:[%s250 + $0x1b0] sm:$0xff]
        %v362 = vld [vmem:[%s250 + $0x1b8] sm:$0xff]
        %v363 = vld [vmem:[%s250 + $0x1c0] sm:$0xff]
        %v364 = vld [vmem:[%s250 + $0x1c8] sm:$0xff]
        %v365 = vld [vmem:[%s250 + $0x1d0] sm:$0xff]
        %v366 = vld [vmem:[%s250 + $0x1d8] sm:$0xff]
        %v367 = vld [vmem:[%s250 + $0x1e0] sm:$0xff]
        %v368 = vld [vmem:[%s250 + $0x1e8] sm:$0xff]
        %v369 = vld [vmem:[%s250 + $0x1f0] sm:$0xff]
        %v370 = vld [vmem:[%s250 + $0x1f8] sm:$0xff]
        %v373 = vunpack.c.l.b16 %v305
        %v374 = vunpack.c.h.b16 %v305
        %v375 = vunpack.c.l.b16 %v306
        %v376 = vunpack.c.h.b16 %v306
        %v377 = vpack.c.b16 %v373, %v373
        %v378 = vpack.c.b16 %v374, %v374
        %v379 = vpack.c.b16 %v375, %v375
        %v380 = vpack.c.b16 %v376, %v376
        %v449 = vunpack.c.l.b16 %v307
        %v450 = vunpack.c.h.b16 %v307
        %v451 = vunpack.c.l.b16 %v308
        %v452 = vunpack.c.h.b16 %v308
        %v453 = vunpack.c.l.b16 %v309
        %v454 = vunpack.c.h.b16 %v309
        %v455 = vunpack.c.l.b16 %v310
        %v456 = vunpack.c.h.b16 %v310
        %v457 = vunpack.c.l.b16 %v311
        %v458 = vunpack.c.h.b16 %v311
        %v459 = vunpack.c.l.b16 %v312
        %v460 = vunpack.c.h.b16 %v312
        %v461 = vunpack.c.l.b16 %v313
        %v462 = vunpack.c.h.b16 %v313
        %v463 = vunpack.c.l.b16 %v314
        %v464 = vunpack.c.h.b16 %v314
        %v465 = vunpack.c.l.b16 %v315
        %v466 = vunpack.c.h.b16 %v315
        %v467 = vunpack.c.l.b16 %v316
        %v468 = vunpack.c.h.b16 %v316
        %v469 = vunpack.c.l.b16 %v317
        %v470 = vunpack.c.h.b16 %v317
        %v471 = vunpack.c.l.b16 %v318
        %v472 = vunpack.c.h.b16 %v318
        %v473 = vunpack.c.l.b16 %v319
        %v474 = vunpack.c.h.b16 %v319
        %v475 = vunpack.c.l.b16 %v320
        %v476 = vunpack.c.h.b16 %v320
        %v477 = vunpack.c.l.b16 %v321
        %v478 = vunpack.c.h.b16 %v321
        %v479 = vunpack.c.l.b16 %v322
        %v480 = vunpack.c.h.b16 %v322
        %v481 = vunpack.c.l.b16 %v323
        %v482 = vunpack.c.h.b16 %v323
        %v483 = vunpack.c.l.b16 %v324
        %v484 = vunpack.c.h.b16 %v324
        %v485 = vunpack.c.l.b16 %v325
        %v486 = vunpack.c.h.b16 %v325
        %v487 = vunpack.c.l.b16 %v326
        %v488 = vunpack.c.h.b16 %v326
        %v489 = vunpack.c.l.b16 %v327
        %v490 = vunpack.c.h.b16 %v327
        %v491 = vunpack.c.l.b16 %v328
        %v492 = vunpack.c.h.b16 %v328
        %v493 = vunpack.c.l.b16 %v329
        %v494 = vunpack.c.h.b16 %v329
        %v495 = vunpack.c.l.b16 %v330
        %v496 = vunpack.c.h.b16 %v330
        %v497 = vunpack.c.l.b16 %v331
        %v498 = vunpack.c.h.b16 %v331
        %v499 = vunpack.c.l.b16 %v332
        %v500 = vunpack.c.h.b16 %v332
        %v501 = vunpack.c.l.b16 %v333
        %v502 = vunpack.c.h.b16 %v333
        %v503 = vunpack.c.l.b16 %v334
        %v504 = vunpack.c.h.b16 %v334
        %v505 = vunpack.c.l.b16 %v335
        %v506 = vunpack.c.h.b16 %v335
        %v507 = vunpack.c.l.b16 %v336
        %v508 = vunpack.c.h.b16 %v336
        %v509 = vunpack.c.l.b16 %v337
        %v510 = vunpack.c.h.b16 %v337
        %v511 = vunpack.c.l.b16 %v338
        %v512 = vunpack.c.h.b16 %v338
        %v513 = vunpack.c.l.b16 %v339
        %v514 = vunpack.c.h.b16 %v339
        %v515 = vunpack.c.l.b16 %v340
        %v516 = vunpack.c.h.b16 %v340
        %v517 = vunpack.c.l.b16 %v341
        %v518 = vunpack.c.h.b16 %v341
        %v519 = vunpack.c.l.b16 %v342
        %v520 = vunpack.c.h.b16 %v342
        %v521 = vunpack.c.l.b16 %v343
        %v522 = vunpack.c.h.b16 %v343
        %v523 = vunpack.c.l.b16 %v344
        %v524 = vunpack.c.h.b16 %v344
        %v525 = vunpack.c.l.b16 %v345
        %v526 = vunpack.c.h.b16 %v345
        %v527 = vunpack.c.l.b16 %v346
        %v528 = vunpack.c.h.b16 %v346
        %v529 = vunpack.c.l.b16 %v347
        %v530 = vunpack.c.h.b16 %v347
        %v531 = vunpack.c.l.b16 %v348
        %v532 = vunpack.c.h.b16 %v348
        %v533 = vunpack.c.l.b16 %v349
        %v534 = vunpack.c.h.b16 %v349
        %v535 = vunpack.c.l.b16 %v350
        %v536 = vunpack.c.h.b16 %v350
        %v537 = vunpack.c.l.b16 %v351
        %v538 = vunpack.c.h.b16 %v351
        %v539 = vunpack.c.l.b16 %v352
        %v540 = vunpack.c.h.b16 %v352
        %v541 = vunpack.c.l.b16 %v353
        %v542 = vunpack.c.h.b16 %v353
        %v543 = vunpack.c.l.b16 %v354
        %v544 = vunpack.c.h.b16 %v354
        %v545 = vunpack.c.l.b16 %v355
        %v546 = vunpack.c.h.b16 %v355
        %v547 = vunpack.c.l.b16 %v356
        %v548 = vunpack.c.h.b16 %v356
        %v549 = vunpack.c.l.b16 %v357
        %v550 = vunpack.c.h.b16 %v357
        %v551 = vunpack.c.l.b16 %v358
        %v552 = vunpack.c.h.b16 %v358
        %v553 = vunpack.c.l.b16 %v359
        %v554 = vunpack.c.h.b16 %v359
        %v555 = vunpack.c.l.b16 %v360
        %v556 = vunpack.c.h.b16 %v360
        %v557 = vunpack.c.l.b16 %v361
        %v558 = vunpack.c.h.b16 %v361
        %v559 = vunpack.c.l.b16 %v362
        %v560 = vunpack.c.h.b16 %v362
        %v561 = vunpack.c.l.b16 %v363
        %v562 = vunpack.c.h.b16 %v363
        %v563 = vunpack.c.l.b16 %v364
        %v564 = vunpack.c.h.b16 %v364
        %v565 = vunpack.c.l.b16 %v365
        %v566 = vunpack.c.h.b16 %v365
        %v567 = vunpack.c.l.b16 %v366
        %v568 = vunpack.c.h.b16 %v366
        %v569 = vunpack.c.l.b16 %v367
        %v570 = vunpack.c.h.b16 %v367
        %v571 = vunpack.c.l.b16 %v368
        %v572 = vunpack.c.h.b16 %v368
        %v573 = vunpack.c.l.b16 %v369
        %v574 = vunpack.c.h.b16 %v369
        %v575 = vunpack.c.l.b16 %v370
        %v576 = vunpack.c.h.b16 %v370
        %v577 = vpack.c.b16 %v451, %v449
        %v578 = vpack.c.b16 %v452, %v450
        %v579 = vpack.c.b16 %v455, %v453
        %v580 = vpack.c.b16 %v456, %v454
        %v581 = vpack.c.b16 %v459, %v457
        %v582 = vpack.c.b16 %v460, %v458
        %v583 = vpack.c.b16 %v463, %v461
        %v584 = vpack.c.b16 %v464, %v462
        %v585 = vpack.c.b16 %v467, %v465
        %v586 = vpack.c.b16 %v468, %v466
        %v587 = vpack.c.b16 %v471, %v469
        %v588 = vpack.c.b16 %v472, %v470
        %v589 = vpack.c.b16 %v475, %v473
        %v590 = vpack.c.b16 %v476, %v474
        %v591 = vpack.c.b16 %v479, %v477
        %v592 = vpack.c.b16 %v480, %v478
        %v593 = vpack.c.b16 %v483, %v481
        %v594 = vpack.c.b16 %v484, %v482
        %v595 = vpack.c.b16 %v487, %v485
        %v596 = vpack.c.b16 %v488, %v486
        %v597 = vpack.c.b16 %v491, %v489
        %v598 = vpack.c.b16 %v492, %v490
        %v599 = vpack.c.b16 %v495, %v493
        %v600 = vpack.c.b16 %v496, %v494
        %v601 = vpack.c.b16 %v499, %v497
        %v602 = vpack.c.b16 %v500, %v498
        %v603 = vpack.c.b16 %v503, %v501
        %v604 = vpack.c.b16 %v504, %v502
        %v605 = vpack.c.b16 %v507, %v505
        %v606 = vpack.c.b16 %v508, %v506
        %v607 = vpack.c.b16 %v511, %v509
        %v608 = vpack.c.b16 %v512, %v510
        %v609 = vpack.c.b16 %v515, %v513
        %v610 = vpack.c.b16 %v516, %v514
        %v611 = vpack.c.b16 %v519, %v517
        %v612 = vpack.c.b16 %v520, %v518
        %v613 = vpack.c.b16 %v523, %v521
        %v614 = vpack.c.b16 %v524, %v522
        %v615 = vpack.c.b16 %v527, %v525
        %v616 = vpack.c.b16 %v528, %v526
        %v617 = vpack.c.b16 %v531, %v529
        %v618 = vpack.c.b16 %v532, %v530
        %v619 = vpack.c.b16 %v535, %v533
        %v620 = vpack.c.b16 %v536, %v534
        %v621 = vpack.c.b16 %v539, %v537
        %v622 = vpack.c.b16 %v540, %v538
        %v623 = vpack.c.b16 %v543, %v541
        %v624 = vpack.c.b16 %v544, %v542
        %v625 = vpack.c.b16 %v547, %v545
        %v626 = vpack.c.b16 %v548, %v546
        %v627 = vpack.c.b16 %v551, %v549
        %v628 = vpack.c.b16 %v552, %v550
        %v629 = vpack.c.b16 %v555, %v553
        %v630 = vpack.c.b16 %v556, %v554
        %v631 = vpack.c.b16 %v559, %v557
        %v632 = vpack.c.b16 %v560, %v558
        %v633 = vpack.c.b16 %v563, %v561
        %v634 = vpack.c.b16 %v564, %v562
        %v635 = vpack.c.b16 %v567, %v565
        %v636 = vpack.c.b16 %v568, %v566
        %v637 = vpack.c.b16 %v571, %v569
        %v638 = vpack.c.b16 %v572, %v570
        %v639 = vpack.c.b16 %v575, %v573
        %v640 = vpack.c.b16 %v576, %v574
        %705 = vmatprep.subr.bf16.mxu0 %v578
        %706 = vmatpush1.bf16.msra.mxu0 %v577
        %707 = vmatprep.subr.bf16.mxu0 %v580
        %708 = vmatpush1.bf16.msra.mxu0 %v579
        %709 = vmatprep.subr.bf16.mxu0 %v582
        %710 = vmatpush1.bf16.msra.mxu0 %v581
        %711 = vmatprep.subr.bf16.mxu0 %v584
        %712 = vmatpush1.bf16.msra.mxu0 %v583
        %713 = vmatprep.subr.bf16.mxu0 %v586
        %714 = vmatpush1.bf16.msra.mxu0 %v585
        %715 = vmatprep.subr.bf16.mxu0 %v588
        %716 = vmatpush1.bf16.msra.mxu0 %v587
        %717 = vmatprep.subr.bf16.mxu0 %v590
        %718 = vmatpush1.bf16.msra.mxu0 %v589
        %719 = vmatprep.subr.bf16.mxu0 %v592
        %720 = vmatpush1.bf16.msra.mxu0 %v591
        %721 = vmatprep.subr.bf16.mxu0 %v594
        %722 = vmatpush1.bf16.msra.mxu0 %v593
        %723 = vmatprep.subr.bf16.mxu0 %v596
        %724 = vmatpush1.bf16.msra.mxu0 %v595
        %725 = vmatprep.subr.bf16.mxu0 %v598
        %726 = vmatpush1.bf16.msra.mxu0 %v597
        %727 = vmatprep.subr.bf16.mxu0 %v600
        %728 = vmatpush1.bf16.msra.mxu0 %v599
        %729 = vmatprep.subr.bf16.mxu0 %v602
        %730 = vmatpush1.bf16.msra.mxu0 %v601
        %731 = vmatprep.subr.bf16.mxu0 %v604
        %732 = vmatpush1.bf16.msra.mxu0 %v603
        %733 = vmatprep.subr.bf16.mxu0 %v606
        %734 = vmatpush1.bf16.msra.mxu0 %v605
        %735 = vmatprep.subr.bf16.mxu0 %v608
        %736 = vmatpush1.bf16.msra.mxu0 %v607
        %737 = vmatprep.mubr.bf16.mxu0 %v378
        %738 = vmatmul.mubr.bf16.gmra.mrb[0].mxu0 %v377
        %v739 = vpop.f32.mrb[0].mxu0
        %v740 = vadd.f32 0.0, %v739
        %v741 = vpop.f32.mrb[0].mxu0
        %v742 = vadd.f32 0.0, %v741
        %v743 = vpop.f32.mrb[0].mxu0
        %v744 = vpop.f32.mrb[0].mxu0
        %745 = vdwg.mxu0
        %746 = vmatprep.subr.bf16.mxu0 %v610
        %747 = vmatpush1.bf16.msra.mxu0 %v609
        %748 = vmatprep.subr.bf16.mxu0 %v612
        %749 = vmatpush1.bf16.msra.mxu0 %v611
        %750 = vmatprep.subr.bf16.mxu0 %v614
        %751 = vmatpush1.bf16.msra.mxu0 %v613
        %752 = vmatprep.subr.bf16.mxu0 %v616
        %753 = vmatpush1.bf16.msra.mxu0 %v615
        %754 = vmatprep.subr.bf16.mxu0 %v618
        %755 = vmatpush1.bf16.msra.mxu0 %v617
        %756 = vmatprep.subr.bf16.mxu0 %v620
        %757 = vmatpush1.bf16.msra.mxu0 %v619
        %758 = vmatprep.subr.bf16.mxu0 %v622
        %759 = vmatpush1.bf16.msra.mxu0 %v621
        %760 = vmatprep.subr.bf16.mxu0 %v624
        %761 = vmatpush1.bf16.msra.mxu0 %v623
        %762 = vmatprep.subr.bf16.mxu0 %v626
        %763 = vmatpush1.bf16.msra.mxu0 %v625
        %764 = vmatprep.subr.bf16.mxu0 %v628
        %765 = vmatpush1.bf16.msra.mxu0 %v627
        %766 = vmatprep.subr.bf16.mxu0 %v630
        %767 = vmatpush1.bf16.msra.mxu0 %v629
        %768 = vmatprep.subr.bf16.mxu0 %v632
        %769 = vmatpush1.bf16.msra.mxu0 %v631
        %770 = vmatprep.subr.bf16.mxu0 %v634
        %771 = vmatpush1.bf16.msra.mxu0 %v633
        %772 = vmatprep.subr.bf16.mxu0 %v636
        %773 = vmatpush1.bf16.msra.mxu0 %v635
        %774 = vmatprep.subr.bf16.mxu0 %v638
        %775 = vmatpush1.bf16.msra.mxu0 %v637
        %776 = vmatprep.subr.bf16.mxu0 %v640
        %777 = vmatpush1.bf16.msra.mxu0 %v639
        %778 = vmatprep.mubr.bf16.mxu0 %v380
        %779 = vmatmul.mubr.bf16.gmra.mrb[0].mxu0 %v379
        %v780 = vpop.f32.mrb[0].mxu0
        %v781 = vadd.f32 %v740, %v780
        %v782 = vpop.f32.mrb[0].mxu0
        %v783 = vadd.f32 %v742, %v782
        %v784 = vpop.f32.mrb[0].mxu0
        %v785 = vpop.f32.mrb[0].mxu0
        %786 = vdwg.mxu0
        %v787 = vadd.f32 %v303, %v781
        %v788 = vadd.f32 %v304, %v783
        %789 = vst [vmem:[#allocation2] sm:$0xff] %v787
        %790 = vst [vmem:[#allocation2 + $0x8] sm:$0xff] %v788
        %p791 = scmp.eq.s32.totalorder %s30, 5
        // Predicated region
        $region49: #{tpu_custom_call.1} parent=31 // pred_check
          %p792 = pneg %p791
        $region50: #{tpu_custom_call.1} parent=31 // pred_check_branch
          %794 = sbr.rel (%p792) target = $region52
        $region51: #{tpu_custom_call.1} parent=31 // pred_region
          %v795 = vld [vmem:[#allocation2] sm:$0xff]
          %v796 = vld [vmem:[#allocation2 + $0x8] sm:$0xff]
          %v797 = vld [vmem:[%s259] sm:$0x3]
          %v799 = vlaneseq
          %v800 = vshrl.u32 %v799, 7
          %v801 = vsub.s32 0, %v800
          %v802 = vrot.slane %v797, %v801
          %v803 = vlaneseq
          %v804 = vshrl.u32 %v803, 7
          %v805 = vsub.s32 1, %v804
          %v806 = vrot.slane %v797, %v805
          %v809 = vadd.f32 %v795, %v802
          %v810 = vadd.f32 %v796, %v806
          %v811 = vpack.c.bf16 %v809, %v809
          %v812 = vpack.c.bf16 %v810, %v810
          %v815 = vunpack.c.l.b16 %v811
          %v816 = vunpack.c.l.b16 %v812
          %v817 = vpack.c.b16 %v816, %v815
          %819 = vst [vmem:[%s291] sm:$0xff] %v817
        $region52: #{tpu_custom_call.1} parent=31 // pred_fallthru
          _
        %s820 = sand.u32 %s134, 1
        %s821 = scalar_lea.sflag [#allocation5], %s820
        %s822 = sand.u32 %s134, 1
        %s823 = smul.addr %s822, 8
        %s824 = scalar_lea.vmem [#allocation9], %s823
        // Predicated region
        $region53: #{tpu_custom_call.1} parent=31 // pred_check
          %p825 = pneg %p144
        $region54: #{tpu_custom_call.1} parent=31 // pred_check_branch
          %827 = sbr.rel (%p825) target = $region56
        $region55: #{tpu_custom_call.1} parent=31 // pred_region
          %s828 = smul.u32 2, %s29
          %s830 = ssub.s32 128, 128
          %831 = vsyncadd %s821, %s830
          %s832 = smul.addr %s28, 8
          %s833 = sadd.s32 %s828, %s832
          %s834 = smul.addr %s833, 64
          %s835 = scalar_lea.hbm %s3, %s834
          %s837 = sshll.u32 %s824, 4
          %s838 = int_to_ptr.vmem [resolvable:$true] %s837
          %840 = dma.vmem_to_hbm [thread:$0]  %s838, 128, %s835, %s821
        $region56: #{tpu_custom_call.1} parent=31 // pred_fallthru
          _
      $region32: #{tpu_custom_call.1} parent=5 // pred_fallthru
        _
      %p841 = scmp.le.s32.totalorder 2, %s18
      // Predicated region
      $region57: #{tpu_custom_call.1} parent=5 // pred_check
        %p842 = pneg %p841
      $region58: #{tpu_custom_call.1} parent=5 // pred_check_branch
        %844 = sbr.rel (%p842) target = $region60
      $region59: #{tpu_custom_call.1} parent=5 // pred_region
        %s845 = ssub.s32 %s18, 2
        // Predicated region
        $region61: #{tpu_custom_call.1} parent=59 // pred_check
          %p846 = pneg %p150
        $region62: #{tpu_custom_call.1} parent=59 // pred_check_branch
          %848 = sbr.rel (%p846) target = $region64
        $region63: #{tpu_custom_call.1} parent=59 // pred_region
          %s849 = sand.u32 %s135, 1
          %s850 = scalar_lea.sflag [#allocation5], %s849
          %s851 = sand.u32 %s135, 1
          %s852 = smul.addr %s851, 8
          %s853 = scalar_lea.vmem [#allocation9], %s852
          %854 = dma.done %s850, 128
        $region64: #{tpu_custom_call.1} parent=59 // pred_fallthru
          _
      $region60: #{tpu_custom_call.1} parent=5 // pred_fallthru
        _
    $region6: #{tpu_custom_call.1} parent=1 // loop_footer
      %s22 = sadd.s32 1, %s18
    $region7: #{tpu_custom_call.1} parent=1 // loop_footer_branch
      %17 = sbr.rel target = $region3
    $region8: #{tpu_custom_call.1} parent=1 // loop_exit
      _
    %855 = vsyncpa [#allocation4], 1
    %s856 = scalar_lea.sflag [#allocation4], 1
    %857 = vsyncpa %s856, 1
    %858 = vsyncpa [#allocation7], 1
    %s859 = scalar_lea.sflag [#allocation7], 1
    %860 = vsyncpa %s859, 1
    %861 = vsyncpa [#allocation5], 1
    %s862 = scalar_lea.sflag [#allocation5], 1
    %863 = vsyncpa %s862, 1

</llo_original>
